<compile_context>
chip_gen: v5e
topology: v5e:2x2
jax: 0.10.0
libtpu: 0.0.40
codegen_flags: <defaults>
</compile_context>

<pallas_src>
import jax
import jax.numpy as jnp
from jax import lax
from jax.experimental import pallas as pl
from jax.experimental.pallas import tpu as pltpu

_HIDDEN = 256
_OPTIONS = 4
_LEAKY_SLOPE = 0.01     # PyTorch LeakyReLU default negative_slope (Python float!)
_MAX_TK = 8192          # K-tile cap: 2 x (8192x512) bf16 W1 buffers = 16 MiB


def _cdiv(a, b):
    return -(-a // b)


def _round_up(n, m):
    return ((n + m - 1) // m) * m


# ----------------------------------------------------------------------------
# Kernel
# ----------------------------------------------------------------------------
def _selector_kernel(x_ref, w1_ref, b1_ref, w2a_ref, b2a_ref, w2c_ref, b2c_ref,
                     pol_ref, q_ref, v_ref, acc_ref):
    k = pl.program_id(0)

    @pl.when(k == 0)
    def _init():
        acc_ref[...] = jnp.zeros_like(acc_ref)

    # Hot loop: one bf16 MXU push per K step, f32 accumulate.  x is pre-cast to
    # bf16 in the wrapper so there is no per-step VPU cast.
    acc_ref[...] += jnp.dot(x_ref[...], w1_ref[...],
                            preferred_element_type=jnp.float32)

    @pl.when(k == pl.num_programs(0) - 1)
    def _finalize():
        h = acc_ref[...] + b1_ref[...]                     # (1, 512) f32
        h = jnp.where(h > 0, h, _LEAKY_SLOPE * h)          # fused LeakyReLU
        h_actor = h[:, :_HIDDEN]                           # (1, 256), vreg-aligned slice
        h_critic = h[:, _HIDDEN:]                          # (1, 256)

        # Head weights stored transposed (4, 256): contract on dim 1 of both sides.
        dn = (((1,), (1,)), ((), ()))
        logits = lax.dot_general(h_actor, w2a_ref[...], dn,
                                 preferred_element_type=jnp.float32) + b2a_ref[...]
        q = lax.dot_general(h_critic, w2c_ref[...], dn,
                            preferred_element_type=jnp.float32) + b2c_ref[...]

        # Exact softmax over the 4 logits (one-off epilogue -> exact divide).
        m = jnp.max(logits, axis=-1, keepdims=True)
        e = jnp.exp(logits - m)
        s = jnp.sum(e, axis=-1, keepdims=True)
        policy = e / s                                      # (1, 4), sums to 1

        v = jnp.sum(policy * q, axis=-1, keepdims=True)     # (1, 1), lanes aligned

        pol_ref[...] = policy
        q_ref[...] = q
        v_ref[...] = v


# ----------------------------------------------------------------------------
# Parameter packing (done once, outside the per-call path)
# ----------------------------------------------------------------------------
def pack_params(params, input_size, max_tk=_MAX_TK):
    """Fuse/pad/transpose PyTorch-layout params into the kernel's packed layout."""
    num_k = max(1, _cdiv(input_size, max_tk))
    tk = _round_up(_cdiv(input_size, num_k), 128)
    d_pad = num_k * tk

    # Fused first layer (D_pad, 512) in bf16: cols 0-255 actor, 256-511 critic.
    w1 = jnp.concatenate([params["w1a"], params["w1c"]], axis=1)          # (D, 512)
    w1 = jnp.pad(w1, ((0, d_pad - input_size), (0, 0))).astype(jnp.bfloat16)
    b1 = jnp.concatenate([params["b1a"], params["b1c"]],
                         axis=1).astype(jnp.float32)                      # (1, 512)

    # Head weights transposed so the minor dim is 256 (no HBM tile padding).
    w2a_t = jnp.transpose(params["w2a"]).astype(jnp.float32)              # (4, 256)
    w2c_t = jnp.transpose(params["w2c"]).astype(jnp.float32)              # (4, 256)
    b2a = params["b2a"].astype(jnp.float32)                               # (1, 4)
    b2c = params["b2c"].astype(jnp.float32)                               # (1, 4)

    return dict(w1=w1, b1=b1, w2a_t=w2a_t, b2a=b2a, w2c_t=w2c_t, b2c=b2c,
                tk=tk, d_pad=d_pad)


# ----------------------------------------------------------------------------
# Wrapper
# ----------------------------------------------------------------------------
def selector_actor_net_forward(x, packed):
    """x: any-shaped array (flattened like torch.flatten). packed: pack_params()."""
    tk = packed["tk"]
    d_pad = packed["d_pad"]
    d = x.size

    # Pre-cast activations to bf16 (halves x-tile DMA, matches bf16 W1 on the MXU).
    x_row = jnp.reshape(x, (1, d)).astype(jnp.bfloat16)
    if d_pad != d:
        x_row = jnp.pad(x_row, ((0, 0), (0, d_pad - d)))
    num_k = d_pad // tk

    grid_spec = pltpu.PrefetchScalarGridSpec(
        num_scalar_prefetch=0,
        grid=(num_k,),
        in_specs=[
            pl.BlockSpec((1, tk), lambda k: (0, k)),                   # x tile (bf16)
            pl.BlockSpec((tk, 2 * _HIDDEN), lambda k: (k, 0)),         # fused W1 tile
            pl.BlockSpec((1, 2 * _HIDDEN), lambda k: (0, 0)),          # fused b1
            pl.BlockSpec((_OPTIONS, _HIDDEN), lambda k: (0, 0)),       # W2a^T (4,256)
            pl.BlockSpec((1, _OPTIONS), lambda k: (0, 0)),             # b2a
            pl.BlockSpec((_OPTIONS, _HIDDEN), lambda k: (0, 0)),       # W2c^T (4,256)
            pl.BlockSpec((1, _OPTIONS), lambda k: (0, 0)),             # b2c
        ],
        out_specs=[
            pl.BlockSpec((1, _OPTIONS), lambda k: (0, 0)),             # policy
            pl.BlockSpec((1, _OPTIONS), lambda k: (0, 0)),             # Q
            pl.BlockSpec((1, 1), lambda k: (0, 0)),                    # V
        ],
        scratch_shapes=[pltpu.VMEM((1, 2 * _HIDDEN), jnp.float32)],    # f32 accumulator
    )

    bytes_accessed = (d_pad * 2 * _HIDDEN * 2            # W1 (bf16)
                      + d_pad * 2                        # x (bf16)
                      + 2 * _HIDDEN * 4                  # b1
                      + 2 * (_OPTIONS * _HIDDEN * 4 + _OPTIONS * 4)   # heads
                      + (2 * _OPTIONS + 1) * 4)          # outputs
    cost = pl.CostEstimate(
        flops=2 * d_pad * 2 * _HIDDEN + 2 * 2 * _HIDDEN * _OPTIONS,
        transcendentals=_OPTIONS,
        bytes_accessed=int(bytes_accessed),
    )

    out_p, out_q, out_v = pl.pallas_call(
        _selector_kernel,
        out_shape=(jax.ShapeDtypeStruct((1, _OPTIONS), jnp.float32),
                   jax.ShapeDtypeStruct((1, _OPTIONS), jnp.float32),
                   jax.ShapeDtypeStruct((1, 1), jnp.float32)),
        grid_spec=grid_spec,
        compiler_params=pltpu.CompilerParams(
            dimension_semantics=("arbitrary",),          # K is a reduction axis
            vmem_limit_bytes=32 * 1024 * 1024,           # covers tk=8192 double-buffer,
        ),                                               # within v7x's 64 MiB physical
        cost_estimate=cost,
    )(x_row, packed["w1"], packed["b1"], packed["w2a_t"], packed["b2a"],
      packed["w2c_t"], packed["b2c"])

    return out_p[0], out_q[0], out_v[0, 0]


# ----------------------------------------------------------------------------
# Init + pure-JAX reference
# ----------------------------------------------------------------------------
def init_params(key, input_size):
    """Deterministic init mimicking torch.nn.Linear defaults (uniform +-1/sqrt(fan_in)).

    Weights stored as (in_features, out_features) so everything computes x @ W + b.
    """
    ks = jax.random.split(key, 8)

    def linear(kw, kb, fan_in, fan_out):
        bound = 1.0 / jnp.sqrt(jnp.float32(fan_in))
        w = jax.random.uniform(kw, (fan_in, fan_out), jnp.float32, -bound, bound)
        b = jax.random.uniform(kb, (1, fan_out), jnp.float32, -bound, bound)
        return w, b

    w1a, b1a = linear(ks[0], ks[1], input_size, _HIDDEN)
    w2a, b2a = linear(ks[2], ks[3], _HIDDEN, _OPTIONS)
    w1c, b1c = linear(ks[4], ks[5], input_size, _HIDDEN)
    w2c, b2c = linear(ks[6], ks[7], _HIDDEN, _OPTIONS)
    return dict(w1a=w1a, b1a=b1a, w2a=w2a, b2a=b2a,
                w1c=w1c, b1c=b1c, w2c=w2c, b2c=b2c)


def _reference_forward(x, p):
    """Pure-JAX f32 reference of the PyTorch module."""
    xf = jnp.reshape(x, (-1,)).astype(jnp.float32)
    h = xf @ p["w1a"] + p["b1a"][0]
    h = jnp.where(h > 0, h, _LEAKY_SLOPE * h)
    logits = h @ p["w2a"] + p["b2a"][0]
    policy = jax.nn.softmax(logits, axis=0)
    hc = xf @ p["w1c"] + p["b1c"][0]
    hc = jnp.where(hc > 0, hc, _LEAKY_SLOPE * hc)
    q = hc @ p["w2c"] + p["b2c"][0]
    v = jnp.sum(q * policy)
    return policy, q, v


if __name__ == "__main__":
    key = jax.random.PRNGKey(0)
    k_x, k_x2, k_p, k_p2 = jax.random.split(key, 4)

    # Case 1: small encoder-like input, single grid step.   D = 2*4*16     = 128.
    # Case 2: larger input, still a single grid step.       D = 2*4*16*16  = 2048.
    # Case 3: same as case 2 but with a forced small K tile to exercise the
    #         multi-step accumulator path (num_k = 4).
    cases = [
        (jax.random.normal(k_x, (2, 4, 16), dtype=jnp.float32), k_p, _MAX_TK),
        (jax.random.normal(k_x2, (2, 4, 16, 16), dtype=jnp.float32), k_p2, _MAX_TK),
        (jax.random.normal(k_x2, (2, 4, 16, 16), dtype=jnp.float32), k_p2, 512),
    ]

    for x, kp, max_tk in cases:
        input_size = x.size
        params = init_params(kp, input_size)
        packed = pack_params(params, input_size, max_tk=max_tk)

        policy, q, v = selector_actor_net_forward(x, packed)
        jax.block_until_ready((policy, q, v))

        ref_policy, ref_q, ref_v = _reference_forward(x, params)
        # bf16 first-layer weights/activations -> loosened tolerances on Q/V.
        assert jnp.allclose(policy, ref_policy, atol=2e-2, rtol=2e-2)
        assert jnp.allclose(q, ref_q, atol=5e-2, rtol=5e-2)
        assert jnp.allclose(v, ref_v, atol=5e-2, rtol=5e-2)
        # Exact softmax divide in the epilogue -> policy sums to 1.
        assert jnp.allclose(jnp.sum(policy), 1.0, atol=1e-5)

    print("KERNEL_OK")
</pallas_src>

<mosaic_0001>
module attributes {stable_mosaic.version = 11 : i64} {
  func.func @_selector_kernel(%arg0: i32, %arg1: memref<1x128xbf16, #tpu.memory_space<vmem>>, %arg2: memref<128x512xbf16, #tpu.memory_space<vmem>>, %arg3: memref<1x512xf32, #tpu.memory_space<vmem>>, %arg4: memref<4x256xf32, #tpu.memory_space<vmem>>, %arg5: memref<1x4xf32, #tpu.memory_space<vmem>>, %arg6: memref<4x256xf32, #tpu.memory_space<vmem>>, %arg7: memref<1x4xf32, #tpu.memory_space<vmem>>, %arg8: memref<1x4xf32, #tpu.memory_space<vmem>>, %arg9: memref<1x4xf32, #tpu.memory_space<vmem>>, %arg10: memref<1x1xf32, #tpu.memory_space<vmem>>, %arg11: memref<1x512xf32, #tpu.memory_space<vmem>>) attributes {dimension_semantics = [#tpu.dimension_semantics<arbitrary>], iteration_bounds = array<i64: 1>, scalar_prefetch = 0 : i64, scratch_operands = 1 : i64, tpu.core_type = #tpu.core_type<tc>, window_params = [{transform_indices = @transform_0, window_bounds = array<i64: 1, 128>}, {transform_indices = @transform_1, window_bounds = array<i64: 128, 512>}, {pipeline_mode = #tpu.pipeline_mode<synchronous>, transform_indices = @transform_2, window_bounds = array<i64: 1, 512>}, {pipeline_mode = #tpu.pipeline_mode<synchronous>, transform_indices = @transform_3, window_bounds = array<i64: 4, 256>}, {pipeline_mode = #tpu.pipeline_mode<synchronous>, transform_indices = @transform_4, window_bounds = array<i64: 1, 4>}, {pipeline_mode = #tpu.pipeline_mode<synchronous>, transform_indices = @transform_5, window_bounds = array<i64: 4, 256>}, {pipeline_mode = #tpu.pipeline_mode<synchronous>, transform_indices = @transform_6, window_bounds = array<i64: 1, 4>}, {pipeline_mode = #tpu.pipeline_mode<synchronous>, transform_indices = @transform_7, window_bounds = array<i64: 1, 4>}, {pipeline_mode = #tpu.pipeline_mode<synchronous>, transform_indices = @transform_8, window_bounds = array<i64: 1, 4>}, {pipeline_mode = #tpu.pipeline_mode<synchronous>, transform_indices = @transform_9, window_bounds = array<i64: 1, 1>}]} {
    %c0_i32 = arith.constant 0 : i32
    %0 = arith.cmpi eq, %arg0, %c0_i32 : i32
    %1 = arith.extui %0 : i1 to i32
    %c0_i32_0 = arith.constant 0 : i32
    %2 = arith.cmpi ne, %1, %c0_i32_0 : i32
    scf.if %2 {
      %cst_10 = arith.constant 0.000000e+00 : f32
      %12 = vector.broadcast %cst_10 : f32 to vector<1x512xf32>
      %c0_11 = arith.constant 0 : index
      %c0_12 = arith.constant 0 : index
      %13 = vector.load %arg11[%c0_11, %c0_12] : memref<1x512xf32, #tpu.memory_space<vmem>>, vector<1x512xf32>
      tpu.vector_store %arg11[%c0_11, %c0_12], %12 {strides = array<i32>} : memref<1x512xf32, #tpu.memory_space<vmem>>, vector<1x512xf32>,
    } else {
    }
    %c0 = arith.constant 0 : index
    %c0_1 = arith.constant 0 : index
    %3 = vector.load %arg11[%c0, %c0_1] : memref<1x512xf32, #tpu.memory_space<vmem>>, vector<1x512xf32>
    %c0_2 = arith.constant 0 : index
    %c0_3 = arith.constant 0 : index
    %4 = vector.load %arg1[%c0_2, %c0_3] : memref<1x128xbf16, #tpu.memory_space<vmem>>, vector<1x128xbf16>
    %c0_4 = arith.constant 0 : index
    %c0_5 = arith.constant 0 : index
    %5 = vector.load %arg2[%c0_4, %c0_5] : memref<128x512xbf16, #tpu.memory_space<vmem>>, vector<128x512xbf16>
    %cst = arith.constant dense<0.000000e+00> : vector<1x512xf32>
    %6 = tpu.matmul %4, %5, %cst {dimension_numbers = #tpu.dot_dimension_numbers<[1], [0], [0], [1], [0, 0, 1, 1], [], []>} : vector<1x128xbf16>, vector<128x512xbf16>, vector<1x512xf32> -> vector<1x512xf32>
    %7 = arith.addf %3, %6 : vector<1x512xf32>
    %c0_6 = arith.constant 0 : index
    %c0_7 = arith.constant 0 : index
    %8 = vector.load %arg11[%c0_6, %c0_7] : memref<1x512xf32, #tpu.memory_space<vmem>>, vector<1x512xf32>
    tpu.vector_store %arg11[%c0_6, %c0_7], %7 {strides = array<i32>} : memref<1x512xf32, #tpu.memory_space<vmem>>, vector<1x512xf32>,
    %c0_i32_8 = arith.constant 0 : i32
    %9 = arith.cmpi eq, %arg0, %c0_i32_8 : i32
    %10 = arith.extui %9 : i1 to i32
    %c0_i32_9 = arith.constant 0 : i32
    %11 = arith.cmpi ne, %10, %c0_i32_9 : i32
    scf.if %11 {
      %c0_10 = arith.constant 0 : index
      %c0_11 = arith.constant 0 : index
      %12 = vector.load %arg11[%c0_10, %c0_11] : memref<1x512xf32, #tpu.memory_space<vmem>>, vector<1x512xf32>
      %c0_12 = arith.constant 0 : index
      %c0_13 = arith.constant 0 : index
      %13 = vector.load %arg3[%c0_12, %c0_13] : memref<1x512xf32, #tpu.memory_space<vmem>>, vector<1x512xf32>
      %14 = arith.addf %12, %13 : vector<1x512xf32>
      %cst_14 = arith.constant 0.000000e+00 : f32
      %15 = vector.broadcast %cst_14 : f32 to vector<1x512xf32>
      %16 = arith.cmpf ogt, %14, %15 : vector<1x512xf32>
      %cst_15 = arith.constant 0.00999999977 : f32
      %17 = vector.broadcast %cst_15 : f32 to vector<1x512xf32>
      %18 = arith.mulf %17, %14 : vector<1x512xf32>
      %19 = arith.select %16, %14, %18 : vector<1x512xi1>, vector<1x512xf32>
      %20 = vector.extract_strided_slice %19 {offsets = [0, 0], sizes = [1, 256], strides = [1, 1]} : vector<1x512xf32> to vector<1x256xf32>
      %21 = vector.extract_strided_slice %19 {offsets = [0, 256], sizes = [1, 256], strides = [1, 1]} : vector<1x512xf32> to vector<1x256xf32>
      %c0_16 = arith.constant 0 : index
      %c0_17 = arith.constant 0 : index
      %22 = vector.load %arg4[%c0_16, %c0_17] : memref<4x256xf32, #tpu.memory_space<vmem>>, vector<4x256xf32>
      %cst_18 = arith.constant dense<0.000000e+00> : vector<1x4xf32>
      %23 = tpu.matmul %20, %22, %cst_18 {dimension_numbers = #tpu.dot_dimension_numbers<[1], [1], [0], [0], [0, 0, 1, 0], [], []>} : vector<1x256xf32>, vector<4x256xf32>, vector<1x4xf32> -> vector<1x4xf32>
      %c0_19 = arith.constant 0 : index
      %c0_20 = arith.constant 0 : index
      %24 = vector.load %arg5[%c0_19, %c0_20] : memref<1x4xf32, #tpu.memory_space<vmem>>, vector<1x4xf32>
      %25 = arith.addf %23, %24 : vector<1x4xf32>
      %c0_21 = arith.constant 0 : index
      %c0_22 = arith.constant 0 : index
      %26 = vector.load %arg6[%c0_21, %c0_22] : memref<4x256xf32, #tpu.memory_space<vmem>>, vector<4x256xf32>
      %cst_23 = arith.constant dense<0.000000e+00> : vector<1x4xf32>
      %27 = tpu.matmul %21, %26, %cst_23 {dimension_numbers = #tpu.dot_dimension_numbers<[1], [1], [0], [0], [0, 0, 1, 0], [], []>} : vector<1x256xf32>, vector<4x256xf32>, vector<1x4xf32> -> vector<1x4xf32>
      %c0_24 = arith.constant 0 : index
      %c0_25 = arith.constant 0 : index
      %28 = vector.load %arg7[%c0_24, %c0_25] : memref<1x4xf32, #tpu.memory_space<vmem>>, vector<1x4xf32>
      %29 = arith.addf %27, %28 : vector<1x4xf32>
      %cst_26 = arith.constant dense<0xFF800000> : vector<1xf32>
      %30 = vector.multi_reduction <maximumf>, %25, %cst_26 [1] : vector<1x4xf32> to vector<1xf32>
      %31 = vector.shape_cast %30 : vector<1xf32> to vector<1x1xf32>
      %32 = vector.broadcast %31 : vector<1x1xf32> to vector<1x4xf32>
      %33 = arith.subf %25, %32 : vector<1x4xf32>
      %34 = math.exp %33 : vector<1x4xf32>
      %cst_27 = arith.constant dense<0.000000e+00> : vector<1xf32>
      %35 = vector.multi_reduction <add>, %34, %cst_27 [1] : vector<1x4xf32> to vector<1xf32>
      %36 = vector.shape_cast %35 : vector<1xf32> to vector<1x1xf32>
      %37 = vector.broadcast %36 : vector<1x1xf32> to vector<1x4xf32>
      %38 = arith.divf %34, %37 : vector<1x4xf32>
      %39 = arith.mulf %38, %29 : vector<1x4xf32>
      %cst_28 = arith.constant dense<0.000000e+00> : vector<1xf32>
      %40 = vector.multi_reduction <add>, %39, %cst_28 [1] : vector<1x4xf32> to vector<1xf32>
      %41 = vector.shape_cast %40 : vector<1xf32> to vector<1x1xf32>
      %c0_29 = arith.constant 0 : index
      %c0_30 = arith.constant 0 : index
      %42 = vector.load %arg8[%c0_29, %c0_30] : memref<1x4xf32, #tpu.memory_space<vmem>>, vector<1x4xf32>
      tpu.vector_store %arg8[%c0_29, %c0_30], %38 {strides = array<i32>} : memref<1x4xf32, #tpu.memory_space<vmem>>, vector<1x4xf32>,
      %c0_31 = arith.constant 0 : index
      %c0_32 = arith.constant 0 : index
      %43 = vector.load %arg9[%c0_31, %c0_32] : memref<1x4xf32, #tpu.memory_space<vmem>>, vector<1x4xf32>
      tpu.vector_store %arg9[%c0_31, %c0_32], %29 {strides = array<i32>} : memref<1x4xf32, #tpu.memory_space<vmem>>, vector<1x4xf32>,
      %c0_33 = arith.constant 0 : index
      %c0_34 = arith.constant 0 : index
      %44 = vector.load %arg10[%c0_33, %c0_34] : memref<1x1xf32, #tpu.memory_space<vmem>>, vector<1x1xf32>
      tpu.vector_store %arg10[%c0_33, %c0_34], %41 {strides = array<i32>} : memref<1x1xf32, #tpu.memory_space<vmem>>, vector<1x1xf32>,
    } else {
    }
    return
  }
  func.func @transform_0(%arg0: i32) -> (i32, i32) {
    %c0_i32 = arith.constant 0 : i32
    %c0_i32_0 = arith.constant 0 : i32
    return %c0_i32, %arg0 : i32, i32
  }
  func.func @transform_1(%arg0: i32) -> (i32, i32) {
    %c0_i32 = arith.constant 0 : i32
    %c0_i32_0 = arith.constant 0 : i32
    return %arg0, %c0_i32 : i32, i32
  }
  func.func @transform_2(%arg0: i32) -> (i32, i32) {
    %c0_i32 = arith.constant 0 : i32
    %c0_i32_0 = arith.constant 0 : i32
    %c0_i32_1 = arith.constant 0 : i32
    return %c0_i32, %c0_i32_0 : i32, i32
  }
  func.func @transform_3(%arg0: i32) -> (i32, i32) {
    %c0_i32 = arith.constant 0 : i32
    %c0_i32_0 = arith.constant 0 : i32
    %c0_i32_1 = arith.constant 0 : i32
    return %c0_i32, %c0_i32_0 : i32, i32
  }
  func.func @transform_4(%arg0: i32) -> (i32, i32) {
    %c0_i32 = arith.constant 0 : i32
    %c0_i32_0 = arith.constant 0 : i32
    %c0_i32_1 = arith.constant 0 : i32
    return %c0_i32, %c0_i32_0 : i32, i32
  }
  func.func @transform_5(%arg0: i32) -> (i32, i32) {
    %c0_i32 = arith.constant 0 : i32
    %c0_i32_0 = arith.constant 0 : i32
    %c0_i32_1 = arith.constant 0 : i32
    return %c0_i32, %c0_i32_0 : i32, i32
  }
  func.func @transform_6(%arg0: i32) -> (i32, i32) {
    %c0_i32 = arith.constant 0 : i32
    %c0_i32_0 = arith.constant 0 : i32
    %c0_i32_1 = arith.constant 0 : i32
    return %c0_i32, %c0_i32_0 : i32, i32
  }
  func.func @transform_7(%arg0: i32) -> (i32, i32) {
    %c0_i32 = arith.constant 0 : i32
    %c0_i32_0 = arith.constant 0 : i32
    %c0_i32_1 = arith.constant 0 : i32
    return %c0_i32, %c0_i32_0 : i32, i32
  }
  func.func @transform_8(%arg0: i32) -> (i32, i32) {
    %c0_i32 = arith.constant 0 : i32
    %c0_i32_0 = arith.constant 0 : i32
    %c0_i32_1 = arith.constant 0 : i32
    return %c0_i32, %c0_i32_0 : i32, i32
  }
  func.func @transform_9(%arg0: i32) -> (i32, i32) {
    %c0_i32 = arith.constant 0 : i32
    %c0_i32_0 = arith.constant 0 : i32
    %c0_i32_1 = arith.constant 0 : i32
    return %c0_i32, %c0_i32_0 : i32, i32
  }
}

</mosaic_0001>

<llo_original>
// kernel: tpu_custom_call.1
$region0: #{tpu_custom_call.1}
  #allocation0 [shape = 'u32[]', space=smem, size = 0x4, offset = 0x4, fixed_abs, tag = 'smem constant byte address 0x4 - core index']
  #allocation1 [shape = 'u32[72,128]{1,0:T(1,128)}', space=vmem, size = 0x9000, scoped, tag = 'internal scratch']
  #allocation2 [shape = 'f32[1,512]{1,0:T(1,128)}', space=vmem, size = 0x800, scoped, tag = 'scratch operand']
  %s0 = inlined_call_operand.hbm [shape: bf16[1,128], index: 0, kind: input, shape index: {}]
  %s1 = inlined_call_operand.hbm [shape: bf16[128,512], index: 1, kind: input, shape index: {}]
  %s2 = inlined_call_operand.hbm [shape: f32[1,512], index: 2, kind: input, shape index: {}]
  %s3 = inlined_call_operand.hbm [shape: f32[4,256], index: 3, kind: input, shape index: {}]
  %s4 = inlined_call_operand.vmem [shape: f32[1,4], index: 4, kind: input, shape index: {}]
  %s5 = inlined_call_operand.hbm [shape: f32[4,256], index: 5, kind: input, shape index: {}]
  %s6 = inlined_call_operand.vmem [shape: f32[1,4], index: 6, kind: input, shape index: {}]
  %s7 = inlined_call_operand.hbm [shape: f32[1,4], index: 7, kind: output, shape index: {0}]
  %s8 = inlined_call_operand.hbm [shape: f32[1,4], index: 8, kind: output, shape index: {1}]
  %s9 = inlined_call_operand.hbm [shape: f32[1,1], index: 9, kind: output, shape index: {2}]
  %10 = xla_tuple %s7, %s8, %s9
  %s11 = sld [smem:[#allocation0]]
  $region82: #{tpu_custom_call.1} parent=0
    _
  %s13 = ssub.s32 1, %s11
  %s14 = scalar_select 0, %s13, %s11
  $region1: #{tpu_custom_call.1} parent=0
    #allocation3 [shape = 'u8[512]{0}', space=vmem, size = 0x400, scoped, tag = 'input window, operand 0, single buffered']
    #allocation4 [shape = 's32[1]{0}', space=sflag, size = 0x4, scoped, tag = 'scoped memory for tpu_custom_call.1']
    #allocation5 [shape = 's32[1]{0}', space=sflag, size = 0x4, scoped, tag = 'scoped memory for tpu_custom_call.1']
    #allocation6 [shape = 'u8[131072]{0}', space=vmem, size = 0x20000, scoped, tag = 'input window, operand 1, single buffered']
    #allocation7 [shape = 's32[1]{0}', space=sflag, size = 0x4, scoped, tag = 'scoped memory for tpu_custom_call.1']
    #allocation8 [shape = 'u8[2048]{0}', space=vmem, size = 0x800, scoped, tag = 'input window, operand 2, single buffered']
    #allocation9 [shape = 'u8[4096]{0}', space=vmem, size = 0x1000, scoped, tag = 'input window, operand 3, single buffered']
    #allocation10 [shape = 's32[1]{0}', space=sflag, size = 0x4, scoped, tag = 'scoped memory for tpu_custom_call.1']
    #allocation11 [shape = 'u8[4096]{0}', space=vmem, size = 0x1000, scoped, tag = 'input window, operand 5, single buffered']
    #allocation12 [shape = 'u8[512]{0}', space=vmem, size = 0x400, scoped, tag = 'output window, operand 0, single buffered']
    #allocation13 [shape = 'u8[512]{0}', space=vmem, size = 0x400, scoped, tag = 'output window, operand 1, single buffered']
    #allocation14 [shape = 's32[1]{0}', space=sflag, size = 0x4, scoped, tag = 'scoped memory for tpu_custom_call.1']
    #allocation15 [shape = 'u8[512]{0}', space=vmem, size = 0x400, scoped, tag = 'output window, operand 2, single buffered']
    %15 = vsyncpa [#allocation4], 0
    %16 = vsyncpa [#allocation7], 0
    %17 = vsyncpa [#allocation10], 0
    %18 = vsyncpa [#allocation5], 0
    %19 = vsyncpa [#allocation14], 0
    // Predicated region
    $region2: #{tpu_custom_call.1} parent=1 // pred_check
      _
    $region3: #{tpu_custom_call.1} parent=1 // pred_check_branch
      %21 = sbr.rel (0) target = $region5
    $region4: #{tpu_custom_call.1} parent=1 // pred_region
      %23 = vsyncadd [#allocation4], 0
      %s25 = sshll.u32 %s0, 4
      %s26 = int_to_ptr.hbm [resolvable:$true] %s25
      %s27 = sshll.u32 [#allocation3], 4
      %s28 = int_to_ptr.vmem [resolvable:$true] %s27
      %30 = dma.hbm_to_vmem [thread:$0]  %s26, 16, %s28, [#allocation4]
    $region5: #{tpu_custom_call.1} parent=1 // pred_fallthru
      _
    // Predicated region
    $region6: #{tpu_custom_call.1} parent=1 // pred_check
      _
    $region7: #{tpu_custom_call.1} parent=1 // pred_check_branch
      %32 = sbr.rel (0) target = $region9
    $region8: #{tpu_custom_call.1} parent=1 // pred_region
      %34 = vsyncadd [#allocation7], 0
      %s35 = sshll.u32 %s1, 4
      %s36 = int_to_ptr.hbm [resolvable:$true] %s35
      %s37 = sshll.u32 [#allocation6], 4
      %s38 = int_to_ptr.vmem [resolvable:$true] %s37
      %43 = dma.hbm_to_vmem [thread:$0]  %s36, 4096, %s38, [#allocation7], 256, 256, 16
    $region9: #{tpu_custom_call.1} parent=1 // pred_fallthru
      _
    // Predicated region
    $region10: #{tpu_custom_call.1} parent=1 // pred_check
      _
    $region11: #{tpu_custom_call.1} parent=1 // pred_check_branch
      %45 = sbr.rel (0) target = $region13
    $region12: #{tpu_custom_call.1} parent=1 // pred_region
      %47 = vsyncadd [#allocation7], 0
      %s49 = sshll.u32 %s2, 4
      %s50 = int_to_ptr.hbm [resolvable:$true] %s49
      %s51 = sshll.u32 [#allocation8], 4
      %s52 = int_to_ptr.vmem [resolvable:$true] %s51
      %54 = dma.hbm_to_vmem [thread:$0]  %s50, 64, %s52, [#allocation7]
    $region13: #{tpu_custom_call.1} parent=1 // pred_fallthru
      _
    // Predicated region
    $region14: #{tpu_custom_call.1} parent=1 // pred_check
      _
    $region15: #{tpu_custom_call.1} parent=1 // pred_check_branch
      %56 = sbr.rel (0) target = $region17
    $region16: #{tpu_custom_call.1} parent=1 // pred_region
      %58 = vsyncadd [#allocation10], 0
      %s60 = sshll.u32 %s3, 4
      %s61 = int_to_ptr.hbm [resolvable:$true] %s60
      %s62 = sshll.u32 [#allocation9], 4
      %s63 = int_to_ptr.vmem [resolvable:$true] %s62
      %65 = dma.hbm_to_vmem [thread:$0]  %s61, 128, %s63, [#allocation10]
    $region17: #{tpu_custom_call.1} parent=1 // pred_fallthru
      _
    // Predicated region
    $region18: #{tpu_custom_call.1} parent=1 // pred_check
      _
    $region19: #{tpu_custom_call.1} parent=1 // pred_check_branch
      %67 = sbr.rel (0) target = $region21
    $region20: #{tpu_custom_call.1} parent=1 // pred_region
      _
    $region21: #{tpu_custom_call.1} parent=1 // pred_fallthru
      _
    // Predicated region
    $region22: #{tpu_custom_call.1} parent=1 // pred_check
      _
    $region23: #{tpu_custom_call.1} parent=1 // pred_check_branch
      %69 = sbr.rel (0) target = $region25
    $region24: #{tpu_custom_call.1} parent=1 // pred_region
      %71 = vsyncadd [#allocation10], 0
      %s73 = sshll.u32 %s5, 4
      %s74 = int_to_ptr.hbm [resolvable:$true] %s73
      %s75 = sshll.u32 [#allocation11], 4
      %s76 = int_to_ptr.vmem [resolvable:$true] %s75
      %78 = dma.hbm_to_vmem [thread:$0]  %s74, 128, %s76, [#allocation10]
    $region25: #{tpu_custom_call.1} parent=1 // pred_fallthru
      _
    // Predicated region
    $region26: #{tpu_custom_call.1} parent=1 // pred_check
      _
    $region27: #{tpu_custom_call.1} parent=1 // pred_check_branch
      %80 = sbr.rel (0) target = $region29
    $region28: #{tpu_custom_call.1} parent=1 // pred_region
      _
    $region29: #{tpu_custom_call.1} parent=1 // pred_fallthru
      _
    // Predicated region
    $region30: #{tpu_custom_call.1} parent=1 // pred_check
      _
    $region31: #{tpu_custom_call.1} parent=1 // pred_check_branch
      %82 = sbr.rel (0) target = $region33
    $region32: #{tpu_custom_call.1} parent=1 // pred_region
      %84 = dma.done [#allocation4], 16
    $region33: #{tpu_custom_call.1} parent=1 // pred_fallthru
      _
    // Predicated region
    $region34: #{tpu_custom_call.1} parent=1 // pred_check
      _
    $region35: #{tpu_custom_call.1} parent=1 // pred_check_branch
      %86 = sbr.rel (0) target = $region37
    $region36: #{tpu_custom_call.1} parent=1 // pred_region
      %88 = dma.done [#allocation7], 4096
    $region37: #{tpu_custom_call.1} parent=1 // pred_fallthru
      _
    // Predicated region
    $region38: #{tpu_custom_call.1} parent=1 // pred_check
      _
    $region39: #{tpu_custom_call.1} parent=1 // pred_check_branch
      %90 = sbr.rel (0) target = $region41
    $region40: #{tpu_custom_call.1} parent=1 // pred_region
      %92 = dma.done [#allocation7], 64
    $region41: #{tpu_custom_call.1} parent=1 // pred_fallthru
      _
    // Predicated region
    $region42: #{tpu_custom_call.1} parent=1 // pred_check
      _
    $region43: #{tpu_custom_call.1} parent=1 // pred_check_branch
      %94 = sbr.rel (0) target = $region45
    $region44: #{tpu_custom_call.1} parent=1 // pred_region
      %96 = dma.done [#allocation10], 128
    $region45: #{tpu_custom_call.1} parent=1 // pred_fallthru
      _
    // Predicated region
    $region46: #{tpu_custom_call.1} parent=1 // pred_check
      _
    $region47: #{tpu_custom_call.1} parent=1 // pred_check_branch
      %98 = sbr.rel (0) target = $region49
    $region48: #{tpu_custom_call.1} parent=1 // pred_region
      %100 = dma.done [#allocation10], 128
    $region49: #{tpu_custom_call.1} parent=1 // pred_fallthru
      _
    %p101 = scmp.eq.s32.totalorder 0, 0
    // Predicated region
    $region50: #{tpu_custom_call.1} parent=1 // pred_check
      %p102 = pneg %p101
    $region51: #{tpu_custom_call.1} parent=1 // pred_check_branch
      %104 = sbr.rel (%p102) target = $region53
    $region52: #{tpu_custom_call.1} parent=1 // pred_region
      %v105 = vlaneseq
      %vm106 = vcmp.ge.s32.totalorder %v105, 0
      %vm107 = vcmp.lt.s32.totalorder %v105, 512
      %vm108 = vmand %vm106, %vm107
      %109 = vst.msk [vmem:[#allocation2] sm:$0xf] %vm108, 0.0
    $region53: #{tpu_custom_call.1} parent=1 // pred_fallthru
      _
    %v110 = vld [vmem:[#allocation2] sm:$0xf]
    %v111 = vld [vmem:[#allocation3] sm:$0x1]
    %v112 = vld [vmem:[#allocation6] sm:$0xff]
    %v113 = vld [vmem:[#allocation6 + $0x8] sm:$0xff]
    %v114 = vld [vmem:[#allocation6 + $0x10] sm:$0xff]
    %v115 = vld [vmem:[#allocation6 + $0x18] sm:$0xff]
    %v116 = vld [vmem:[#allocation6 + $0x20] sm:$0xff]
    %v117 = vld [vmem:[#allocation6 + $0x28] sm:$0xff]
    %v118 = vld [vmem:[#allocation6 + $0x30] sm:$0xff]
    %v119 = vld [vmem:[#allocation6 + $0x38] sm:$0xff]
    %v120 = vld [vmem:[#allocation6 + $0x40] sm:$0xff]
    %v121 = vld [vmem:[#allocation6 + $0x48] sm:$0xff]
    %v122 = vld [vmem:[#allocation6 + $0x50] sm:$0xff]
    %v123 = vld [vmem:[#allocation6 + $0x58] sm:$0xff]
    %v124 = vld [vmem:[#allocation6 + $0x60] sm:$0xff]
    %v125 = vld [vmem:[#allocation6 + $0x68] sm:$0xff]
    %v126 = vld [vmem:[#allocation6 + $0x70] sm:$0xff]
    %v127 = vld [vmem:[#allocation6 + $0x78] sm:$0xff]
    %v128 = vld [vmem:[#allocation6 + $0x80] sm:$0xff]
    %v129 = vld [vmem:[#allocation6 + $0x88] sm:$0xff]
    %v130 = vld [vmem:[#allocation6 + $0x90] sm:$0xff]
    %v131 = vld [vmem:[#allocation6 + $0x98] sm:$0xff]
    %v132 = vld [vmem:[#allocation6 + $0xa0] sm:$0xff]
    %v133 = vld [vmem:[#allocation6 + $0xa8] sm:$0xff]
    %v134 = vld [vmem:[#allocation6 + $0xb0] sm:$0xff]
    %v135 = vld [vmem:[#allocation6 + $0xb8] sm:$0xff]
    %v136 = vld [vmem:[#allocation6 + $0xc0] sm:$0xff]
    %v137 = vld [vmem:[#allocation6 + $0xc8] sm:$0xff]
    %v138 = vld [vmem:[#allocation6 + $0xd0] sm:$0xff]
    %v139 = vld [vmem:[#allocation6 + $0xd8] sm:$0xff]
    %v140 = vld [vmem:[#allocation6 + $0xe0] sm:$0xff]
    %v141 = vld [vmem:[#allocation6 + $0xe8] sm:$0xff]
    %v142 = vld [vmem:[#allocation6 + $0xf0] sm:$0xff]
    %v143 = vld [vmem:[#allocation6 + $0xf8] sm:$0xff]
    %v176 = vunpack.c.l.b16 %v112
    %v177 = vunpack.c.h.b16 %v112
    %v178 = vunpack.c.l.b16 %v113
    %v179 = vunpack.c.h.b16 %v113
    %v180 = vunpack.c.l.b16 %v114
    %v181 = vunpack.c.h.b16 %v114
    %v182 = vunpack.c.l.b16 %v115
    %v183 = vunpack.c.h.b16 %v115
    %v184 = vunpack.c.l.b16 %v116
    %v185 = vunpack.c.h.b16 %v116
    %v186 = vunpack.c.l.b16 %v117
    %v187 = vunpack.c.h.b16 %v117
    %v188 = vunpack.c.l.b16 %v118
    %v189 = vunpack.c.h.b16 %v118
    %v190 = vunpack.c.l.b16 %v119
    %v191 = vunpack.c.h.b16 %v119
    %v192 = vunpack.c.l.b16 %v120
    %v193 = vunpack.c.h.b16 %v120
    %v194 = vunpack.c.l.b16 %v121
    %v195 = vunpack.c.h.b16 %v121
    %v196 = vunpack.c.l.b16 %v122
    %v197 = vunpack.c.h.b16 %v122
    %v198 = vunpack.c.l.b16 %v123
    %v199 = vunpack.c.h.b16 %v123
    %v200 = vunpack.c.l.b16 %v124
    %v201 = vunpack.c.h.b16 %v124
    %v202 = vunpack.c.l.b16 %v125
    %v203 = vunpack.c.h.b16 %v125
    %v204 = vunpack.c.l.b16 %v126
    %v205 = vunpack.c.h.b16 %v126
    %v206 = vunpack.c.l.b16 %v127
    %v207 = vunpack.c.h.b16 %v127
    %v208 = vunpack.c.l.b16 %v128
    %v209 = vunpack.c.h.b16 %v128
    %v210 = vunpack.c.l.b16 %v129
    %v211 = vunpack.c.h.b16 %v129
    %v212 = vunpack.c.l.b16 %v130
    %v213 = vunpack.c.h.b16 %v130
    %v214 = vunpack.c.l.b16 %v131
    %v215 = vunpack.c.h.b16 %v131
    %v216 = vunpack.c.l.b16 %v132
    %v217 = vunpack.c.h.b16 %v132
    %v218 = vunpack.c.l.b16 %v133
    %v219 = vunpack.c.h.b16 %v133
    %v220 = vunpack.c.l.b16 %v134
    %v221 = vunpack.c.h.b16 %v134
    %v222 = vunpack.c.l.b16 %v135
    %v223 = vunpack.c.h.b16 %v135
    %v224 = vunpack.c.l.b16 %v136
    %v225 = vunpack.c.h.b16 %v136
    %v226 = vunpack.c.l.b16 %v137
    %v227 = vunpack.c.h.b16 %v137
    %v228 = vunpack.c.l.b16 %v138
    %v229 = vunpack.c.h.b16 %v138
    %v230 = vunpack.c.l.b16 %v139
    %v231 = vunpack.c.h.b16 %v139
    %v232 = vunpack.c.l.b16 %v140
    %v233 = vunpack.c.h.b16 %v140
    %v234 = vunpack.c.l.b16 %v141
    %v235 = vunpack.c.h.b16 %v141
    %v236 = vunpack.c.l.b16 %v142
    %v237 = vunpack.c.h.b16 %v142
    %v238 = vunpack.c.l.b16 %v143
    %v239 = vunpack.c.h.b16 %v143
    %v240 = vpack.c.b16 %v180, %v176
    %v241 = vpack.c.b16 %v181, %v177
    %v242 = vpack.c.b16 %v182, %v178
    %v243 = vpack.c.b16 %v183, %v179
    %v244 = vpack.c.b16 %v188, %v184
    %v245 = vpack.c.b16 %v189, %v185
    %v246 = vpack.c.b16 %v190, %v186
    %v247 = vpack.c.b16 %v191, %v187
    %v248 = vpack.c.b16 %v196, %v192
    %v249 = vpack.c.b16 %v197, %v193
    %v250 = vpack.c.b16 %v198, %v194
    %v251 = vpack.c.b16 %v199, %v195
    %v252 = vpack.c.b16 %v204, %v200
    %v253 = vpack.c.b16 %v205, %v201
    %v254 = vpack.c.b16 %v206, %v202
    %v255 = vpack.c.b16 %v207, %v203
    %v256 = vpack.c.b16 %v212, %v208
    %v257 = vpack.c.b16 %v213, %v209
    %v258 = vpack.c.b16 %v214, %v210
    %v259 = vpack.c.b16 %v215, %v211
    %v260 = vpack.c.b16 %v220, %v216
    %v261 = vpack.c.b16 %v221, %v217
    %v262 = vpack.c.b16 %v222, %v218
    %v263 = vpack.c.b16 %v223, %v219
    %v264 = vpack.c.b16 %v228, %v224
    %v265 = vpack.c.b16 %v229, %v225
    %v266 = vpack.c.b16 %v230, %v226
    %v267 = vpack.c.b16 %v231, %v227
    %v268 = vpack.c.b16 %v236, %v232
    %v269 = vpack.c.b16 %v237, %v233
    %v270 = vpack.c.b16 %v238, %v234
    %v271 = vpack.c.b16 %v239, %v235
    %304 = vmatpush.bf16.msra.mxu0 %v268
    %305 = vmatpush.bf16.msra.mxu0 %v264
    %306 = vmatpush.bf16.msra.mxu0 %v260
    %307 = vmatpush.bf16.msra.mxu0 %v256
    %308 = vmatpush.bf16.msra.mxu0 %v252
    %309 = vmatpush.bf16.msra.mxu0 %v248
    %310 = vmatpush.bf16.msra.mxu0 %v244
    %311 = vmatpush.bf16.msra.mxu0 %v240
    %312 = vmatmul.bf16.gmra.mxu0 %v111
    %v313 = vpop.f32.mrf.mxu0
    %v314 = vadd.f32 0.0, %v313
    %v315 = vpop.f32.mrf.mxu0
    %316 = vdwg.mxu0
    %317 = vmatpush.bf16.msra.mxu0 %v269
    %318 = vmatpush.bf16.msra.mxu0 %v265
    %319 = vmatpush.bf16.msra.mxu0 %v261
    %320 = vmatpush.bf16.msra.mxu0 %v257
    %321 = vmatpush.bf16.msra.mxu0 %v253
    %322 = vmatpush.bf16.msra.mxu0 %v249
    %323 = vmatpush.bf16.msra.mxu0 %v245
    %324 = vmatpush.bf16.msra.mxu0 %v241
    %325 = vmatmul.bf16.gmra.mxu0 %v111
    %v326 = vpop.f32.mrf.mxu0
    %v327 = vadd.f32 0.0, %v326
    %v328 = vpop.f32.mrf.mxu0
    %329 = vdwg.mxu0
    %330 = vmatpush.bf16.msra.mxu0 %v270
    %331 = vmatpush.bf16.msra.mxu0 %v266
    %332 = vmatpush.bf16.msra.mxu0 %v262
    %333 = vmatpush.bf16.msra.mxu0 %v258
    %334 = vmatpush.bf16.msra.mxu0 %v254
    %335 = vmatpush.bf16.msra.mxu0 %v250
    %336 = vmatpush.bf16.msra.mxu0 %v246
    %337 = vmatpush.bf16.msra.mxu0 %v242
    %338 = vmatmul.bf16.gmra.mxu0 %v111
    %v339 = vpop.f32.mrf.mxu0
    %v340 = vadd.f32 0.0, %v339
    %v341 = vpop.f32.mrf.mxu0
    %342 = vdwg.mxu0
    %343 = vmatpush.bf16.msra.mxu0 %v271
    %344 = vmatpush.bf16.msra.mxu0 %v267
    %345 = vmatpush.bf16.msra.mxu0 %v263
    %346 = vmatpush.bf16.msra.mxu0 %v259
    %347 = vmatpush.bf16.msra.mxu0 %v255
    %348 = vmatpush.bf16.msra.mxu0 %v251
    %349 = vmatpush.bf16.msra.mxu0 %v247
    %350 = vmatpush.bf16.msra.mxu0 %v243
    %351 = vmatmul.bf16.gmra.mxu0 %v111
    %v352 = vpop.f32.mrf.mxu0
    %v353 = vadd.f32 0.0, %v352
    %v354 = vpop.f32.mrf.mxu0
    %355 = vdwg.mxu0
    %v360 = vrot.slane %v327, 7
    %v361 = vrot.slane %v340, 6
    %v362 = vrot.slane %v353, 5
    %vm363 = vcmask 1040384
    %v364 = vsel %vm363, %v314, %v360
    %vm365 = vcmask 1042434
    %v366 = vsel %vm365, %v361, %v362
    %vm367 = vcmask 1041408
    %v368 = vsel %vm367, %v364, %v366
    %v370 = vadd.f32 %v110, %v368
    %v371 = vlaneseq
    %vm372 = vcmp.ge.s32.totalorder %v371, 0
    %vm373 = vcmp.lt.s32.totalorder %v371, 512
    %vm374 = vmand %vm372, %vm373
    %375 = vst.msk [vmem:[#allocation2] sm:$0xf] %vm374, %v370
    // Predicated region
    $region54: #{tpu_custom_call.1} parent=1 // pred_check
      %p376 = pneg %p101
    $region55: #{tpu_custom_call.1} parent=1 // pred_check_branch
      %378 = sbr.rel (%p376) target = $region57
    $region56: #{tpu_custom_call.1} parent=1 // pred_region
      %v379 = vld [vmem:[#allocation2] sm:$0xf]
      %v380 = vld [vmem:[#allocation8] sm:$0xf]
      %v381 = vadd.f32 %v379, %v380
      %vm382 = vcmp.gt.f32.partialorder %v381, 0.0
      %v383 = vmul.f32 %v381, 0.01
      %v384 = vsel %vm382, %v381, %v383
      %v385 = vld [vmem:[#allocation9] sm:$0xff]
      %v386 = vld [vmem:[%s4] sm:$0x1]
      %v388 = vperm.slane %v384, 0
      %v389 = vperm.slane %v384, 1
      %393 = vst [vmem:[#allocation1] ss:$2 sm:$0xff] %v385
      %v394 = vld.sshfl [vmem:[#allocation1] sm:$0xff pattern:$0x75316420]
      %v395 = vld.sshfl [vmem:[#allocation1 + $0x8] sm:$0xff pattern:$0x75316420]
      %398 = vmatpush.xpose.msra.mxu0 0.0
      %399 = vmatpush.xpose.msra.mxu0 0.0
      %400 = vmatpush.xpose.msra.mxu0 0.0
      %401 = vmatpush.xpose.msra.mxu0 0.0
      %402 = vmatpush.xpose.msra.mxu0 0.0
      %403 = vmatpush.xpose.msra.mxu0 0.0
      %404 = vmatpush.xpose.msra.mxu0 0.0
      %405 = vmatpush.xpose.msra.mxu0 0.0
      %406 = vmatpush.xpose.msra.mxu0 0.0
      %407 = vmatpush.xpose.msra.mxu0 0.0
      %408 = vmatpush.xpose.msra.mxu0 0.0
      %409 = vmatpush.xpose.msra.mxu0 0.0
      %410 = vmatpush.xpose.msra.mxu0 0.0
      %411 = vmatpush.xpose.msra.mxu0 0.0
      %412 = vmatpush.xpose.msra.mxu0 0.0
      %413 = vmatpush.xpose.msra.mxu0 %v394
      %414 = vmatmul.f32.gmra.mxu0 %v388
      %v415 = vpop.f32.mrf.mxu0
      %v416 = vadd.f32 %v386, %v415
      %417 = vdwg.mxu0
      %418 = vmatpush.xpose.msra.mxu0 0.0
      %419 = vmatpush.xpose.msra.mxu0 0.0
      %420 = vmatpush.xpose.msra.mxu0 0.0
      %421 = vmatpush.xpose.msra.mxu0 0.0
      %422 = vmatpush.xpose.msra.mxu0 0.0
      %423 = vmatpush.xpose.msra.mxu0 0.0
      %424 = vmatpush.xpose.msra.mxu0 0.0
      %425 = vmatpush.xpose.msra.mxu0 0.0
      %426 = vmatpush.xpose.msra.mxu0 0.0
      %427 = vmatpush.xpose.msra.mxu0 0.0
      %428 = vmatpush.xpose.msra.mxu0 0.0
      %429 = vmatpush.xpose.msra.mxu0 0.0
      %430 = vmatpush.xpose.msra.mxu0 0.0
      %431 = vmatpush.xpose.msra.mxu0 0.0
      %432 = vmatpush.xpose.msra.mxu0 0.0
      %433 = vmatpush.xpose.msra.mxu0 %v395
      %434 = vmatmul.f32.gmra.mxu0 %v389
      %v435 = vpop.f32.mrf.mxu0
      %v436 = vadd.f32 %v416, %v435
      %437 = vdwg.mxu0
      %v438 = vld [vmem:[#allocation11] sm:$0xff]
      %v439 = vld [vmem:[%s6] sm:$0x1]
      %v440 = vperm.slane %v384, 2
      %v441 = vperm.slane %v384, 3
      %445 = vst [vmem:[#allocation1] ss:$2 sm:$0xff] %v438
      %v446 = vld.sshfl [vmem:[#allocation1] sm:$0xff pattern:$0x75316420]
      %v447 = vld.sshfl [vmem:[#allocation1 + $0x8] sm:$0xff pattern:$0x75316420]
      %450 = vmatpush.xpose.msra.mxu0 0.0
      %451 = vmatpush.xpose.msra.mxu0 0.0
      %452 = vmatpush.xpose.msra.mxu0 0.0
      %453 = vmatpush.xpose.msra.mxu0 0.0
      %454 = vmatpush.xpose.msra.mxu0 0.0
      %455 = vmatpush.xpose.msra.mxu0 0.0
      %456 = vmatpush.xpose.msra.mxu0 0.0
      %457 = vmatpush.xpose.msra.mxu0 0.0
      %458 = vmatpush.xpose.msra.mxu0 0.0
      %459 = vmatpush.xpose.msra.mxu0 0.0
      %460 = vmatpush.xpose.msra.mxu0 0.0
      %461 = vmatpush.xpose.msra.mxu0 0.0
      %462 = vmatpush.xpose.msra.mxu0 0.0
      %463 = vmatpush.xpose.msra.mxu0 0.0
      %464 = vmatpush.xpose.msra.mxu0 0.0
      %465 = vmatpush.xpose.msra.mxu0 %v446
      %466 = vmatmul.f32.gmra.mxu0 %v440
      %v467 = vpop.f32.mrf.mxu0
      %v468 = vadd.f32 %v439, %v467
      %469 = vdwg.mxu0
      %470 = vmatpush.xpose.msra.mxu0 0.0
      %471 = vmatpush.xpose.msra.mxu0 0.0
      %472 = vmatpush.xpose.msra.mxu0 0.0
      %473 = vmatpush.xpose.msra.mxu0 0.0
      %474 = vmatpush.xpose.msra.mxu0 0.0
      %475 = vmatpush.xpose.msra.mxu0 0.0
      %476 = vmatpush.xpose.msra.mxu0 0.0
      %477 = vmatpush.xpose.msra.mxu0 0.0
      %478 = vmatpush.xpose.msra.mxu0 0.0
      %479 = vmatpush.xpose.msra.mxu0 0.0
      %480 = vmatpush.xpose.msra.mxu0 0.0
      %481 = vmatpush.xpose.msra.mxu0 0.0
      %482 = vmatpush.xpose.msra.mxu0 0.0
      %483 = vmatpush.xpose.msra.mxu0 0.0
      %484 = vmatpush.xpose.msra.mxu0 0.0
      %485 = vmatpush.xpose.msra.mxu0 %v447
      %486 = vmatmul.f32.gmra.mxu0 %v441
      %v487 = vpop.f32.mrf.mxu0
      %v488 = vadd.f32 %v468, %v487
      %489 = vdwg.mxu0
      %vm490 = vcmask 24576
      %v491 = vsel %vm490, %v436, -inf
      %492 = vmax.xlane.f32.xlu0 %v491
      %v493 = vpop.xlane.xlu0 %492
      %v494 = vsub.f32 %v436, %v493
      %v495 = vmul.f32 %v494, 1.442695
      %v496 = vpow.pop %v495
      %v497 = vsel %vm490, %v496, 0.0
      %498 = vadd.xlane.f32.xlu0 %v497
      %v499 = vpop.xlane.xlu0 %498
      %v500 = vrcp.pop %v499
      %v501 = vmul.f32 %v499, %v500
      %v502 = vsub.f32 1.0, %v501
      %v503 = vmul.f32 %v500, %v502
      %v504 = vadd.f32 %v500, %v503
      %vm505 = vweird.f32 %v499
      %vm506 = vweird.f32 %v500
      %vm507 = vmor %vm505, %vm506
      %v508 = vsel %vm507, %v500, %v504
      %v509 = vand.u32 2147483647, %v499
      %vm510 = vcmp.eq.f32.partialorder %v509, 8.507059e+37
      %v511 = vand.u32 %v499, 2147483648
      %v512 = vor.u32 1.1754944e-38, %v511
      %v513 = vsel %vm510, %v512, %v508
      %v514 = vmul.f32 %v496, %v513
      %v515 = vmul.f32 %v514, %v488
      %v516 = vsel %vm490, %v515, 0.0
      %517 = vadd.xlane.f32.xlu0 %v516
      %v518 = vpop.xlane.xlu0 %517
      %519 = vst.msk [vmem:[#allocation12] sm:$0x1] %vm490, %v514
      %520 = vst.msk [vmem:[#allocation13] sm:$0x1] %vm490, %v488
      %vm521 = vcmask 0
      %522 = vst.msk [vmem:[#allocation15] sm:$0x1] %vm521, %v518
    $region57: #{tpu_custom_call.1} parent=1 // pred_fallthru
      _
    // Predicated region
    $region58: #{tpu_custom_call.1} parent=1 // pred_check
      _
    $region59: #{tpu_custom_call.1} parent=1 // pred_check_branch
      %524 = sbr.rel (0) target = $region61
    $region60: #{tpu_custom_call.1} parent=1 // pred_region
      %526 = vsyncadd [#allocation5], 0
      %s528 = sshll.u32 [#allocation12], 4
      %s529 = int_to_ptr.vmem [resolvable:$true] %s528
      %s530 = sshll.u32 %s7, 4
      %s531 = int_to_ptr.hbm [resolvable:$true] %s530
      %533 = dma.vmem_to_hbm [thread:$0]  %s529, 16, %s531, [#allocation5]
    $region61: #{tpu_custom_call.1} parent=1 // pred_fallthru
      _
    // Predicated region
    $region62: #{tpu_custom_call.1} parent=1 // pred_check
      _
    $region63: #{tpu_custom_call.1} parent=1 // pred_check_branch
      %535 = sbr.rel (0) target = $region65
    $region64: #{tpu_custom_call.1} parent=1 // pred_region
      %537 = vsyncadd [#allocation14], 0
      %s539 = sshll.u32 [#allocation13], 4
      %s540 = int_to_ptr.vmem [resolvable:$true] %s539
      %s541 = sshll.u32 %s8, 4
      %s542 = int_to_ptr.hbm [resolvable:$true] %s541
      %544 = dma.vmem_to_hbm [thread:$0]  %s540, 16, %s542, [#allocation14]
    $region65: #{tpu_custom_call.1} parent=1 // pred_fallthru
      _
    // Predicated region
    $region66: #{tpu_custom_call.1} parent=1 // pred_check
      _
    $region67: #{tpu_custom_call.1} parent=1 // pred_check_branch
      %546 = sbr.rel (0) target = $region69
    $region68: #{tpu_custom_call.1} parent=1 // pred_region
      %548 = vsyncadd [#allocation14], 0
      %s550 = sshll.u32 [#allocation15], 4
      %s551 = int_to_ptr.vmem [resolvable:$true] %s550
      %s552 = sshll.u32 %s9, 4
      %s553 = int_to_ptr.hbm [resolvable:$true] %s552
      %555 = dma.vmem_to_hbm [thread:$0]  %s551, 16, %s553, [#allocation14]
    $region69: #{tpu_custom_call.1} parent=1 // pred_fallthru
      _
    // Predicated region
    $region70: #{tpu_custom_call.1} parent=1 // pred_check
      _
    $region71: #{tpu_custom_call.1} parent=1 // pred_check_branch
      %557 = sbr.rel (0) target = $region73
    $region72: #{tpu_custom_call.1} parent=1 // pred_region
      %559 = dma.done [#allocation5], 16
    $region73: #{tpu_custom_call.1} parent=1 // pred_fallthru
      _
    // Predicated region
    $region74: #{tpu_custom_call.1} parent=1 // pred_check
      _
    $region75: #{tpu_custom_call.1} parent=1 // pred_check_branch
      %561 = sbr.rel (0) target = $region77
    $region76: #{tpu_custom_call.1} parent=1 // pred_region
      %563 = dma.done [#allocation14], 16
    $region77: #{tpu_custom_call.1} parent=1 // pred_fallthru
      _
    // Predicated region
    $region78: #{tpu_custom_call.1} parent=1 // pred_check
      _
    $region79: #{tpu_custom_call.1} parent=1 // pred_check_branch
      %565 = sbr.rel (0) target = $region81
    $region80: #{tpu_custom_call.1} parent=1 // pred_region
      %567 = dma.done [#allocation14], 16
    $region81: #{tpu_custom_call.1} parent=1 // pred_fallthru
      _
    %568 = vsyncpa [#allocation4], 1
    %569 = vsyncpa [#allocation7], 1
    %570 = vsyncpa [#allocation10], 1
    %571 = vsyncpa [#allocation5], 1
    %572 = vsyncpa [#allocation14], 1

</llo_original>
